<compile_context>
chip_gen: v6e
topology: v6e:2x2x1
jax: 0.10.0
libtpu: 0.0.40
codegen_flags: <defaults>
</compile_context>

<pallas_src>
import jax
import jax.numpy as jnp
import numpy as np
from jax.experimental import pallas as pl
from jax.experimental.pallas import tpu as pltpu

SCENARIOS = ("recession", "inflation", "credit_crunch", "market_crash")
NUM_S = len(SCENARIOS)

# stress amplifiers exactly as in the PyTorch module (__init__)
AMPS = np.array(
    [[0.3, -0.5, 0.8, -0.3],   # recession
     [0.5,  0.2, -0.2, 0.1],   # inflation
     [0.7, -0.3, 0.9, -0.6],   # credit_crunch
     [0.9, -0.8, 1.2, -0.9]],  # market_crash
    dtype=np.float32)

D = 4            # input_dim (forced to 4 by the amplifier vectors)
H = 32           # hidden_dim
H2 = H // 2      # 16
B = 8            # batch

# ---------------- packed parameter slab layout (f32 [SLAB_ROWS, 32]) ----------------
# Every piece starts on an 8-row (sublane-tile) boundary; narrow pieces use cols [0:w).
SLAB_COLS = H                 # 32 (lane width used; padded to 128 lanes in vregs)
R_G_W1, R_G_B1 = 0, 8         # [4,32], [1,32]
R_G_W2, R_G_B2 = 16, 48       # [32,32], [1,32]
R_G_W3, R_G_B3 = 56, 88       # [32,4],  [1,4]
R_C_W1A, R_C_W1B, R_C_B1 = 96, 104, 112   # [4,32], [4,32], [1,32]
R_C_W2, R_C_B2 = 120, 152     # [32,16], [1,16]
R_C_W3T, R_C_B3 = 160, 168    # [1,16],  [1,1]
R_AMPS = 176                  # [NUM_S*B, 4] = amps*0.1, each scenario row repeated B times
SLAB_ROWS = R_AMPS + NUM_S * B            # 208

# advisory cost estimate
_FLOPS = (2 * B * D * H            # x @ g_w1
          + 2 * B * H * H          # h1 @ g_w2
          + 2 * B * H * D          # h2 @ g_w3
          + 2 * NUM_S * B * D      # stress combine
          + 2 * B * D * H          # x @ c_w1a
          + 2 * NUM_S * B * D * H  # stressed @ c_w1b
          + 2 * NUM_S * B * H * H2 # c1 @ c_w2
          + 2 * NUM_S * B * H2)    # final reduction
_TRANS = B * D + NUM_S * B         # tanh + sigmoid
_BYTES = 4 * (B * D + SLAB_ROWS * SLAB_COLS + NUM_S * B * D + NUM_S * B)


def _k4_matmul(x, w):
    """x:[M,4] @ w:[4,N] as 4 VPU broadcast-FMAs (a K=4 MXU dot would waste the array)."""
    acc = x[:, 0:1] * w[0:1, :]
    for k in range(1, D):
        acc = acc + x[:, k:k + 1] * w[k:k + 1, :]
    return acc


def _adv_kernel(x_ref, w_ref, stressed_ref, scores_ref):
    x = x_ref[...]                                              # [B, D]

    # static slices of the single packed weight slab (one DMA for all parameters)
    g_w1  = w_ref[R_G_W1:R_G_W1 + D, :]                         # [4, 32]
    g_b1  = w_ref[R_G_B1:R_G_B1 + 1, :]                         # [1, 32]
    g_w2  = w_ref[R_G_W2:R_G_W2 + H, :]                         # [32, 32]
    g_b2  = w_ref[R_G_B2:R_G_B2 + 1, :]                         # [1, 32]
    g_w3  = w_ref[R_G_W3:R_G_W3 + H, 0:D]                       # [32, 4]
    g_b3  = w_ref[R_G_B3:R_G_B3 + 1, 0:D]                       # [1, 4]
    c_w1a = w_ref[R_C_W1A:R_C_W1A + D, :]                       # [4, 32]
    c_w1b = w_ref[R_C_W1B:R_C_W1B + D, :]                       # [4, 32]
    c_b1  = w_ref[R_C_B1:R_C_B1 + 1, :]                         # [1, 32]
    c_w2  = w_ref[R_C_W2:R_C_W2 + H, 0:H2]                      # [32, 16]
    c_b2  = w_ref[R_C_B2:R_C_B2 + 1, 0:H2]                      # [1, 16]
    c_w3t = w_ref[R_C_W3T:R_C_W3T + 1, 0:H2]                    # [1, 16]
    c_b3  = w_ref[R_C_B3:R_C_B3 + 1, 0:1]                       # [1, 1]
    amps  = w_ref[R_AMPS:R_AMPS + NUM_S * B, 0:D]               # [4B, D], = amp*0.1 per row

    # ---- scenario_generator MLP (identical for every scenario, computed once) ----
    h1 = jnp.maximum(_k4_matmul(x, g_w1) + g_b1, 0.0)                               # [B, H]
    h2 = jnp.maximum(
        jnp.dot(h1, g_w2, preferred_element_type=jnp.float32) + g_b2, 0.0)          # [B, H]
    pert = jnp.tanh(
        jnp.dot(h2, g_w3, preferred_element_type=jnp.float32) + g_b3)               # [B, D]

    # ---- all 4 stress scenarios batched into one (4B, D) pass; single store ----
    x_rep = jnp.concatenate([x, x, x, x], axis=0)                                   # [4B, D]
    pert_rep = jnp.concatenate([pert, pert, pert, pert], axis=0)                    # [4B, D]
    stressed = x_rep + pert_rep * amps                                              # [4B, D]
    stressed_ref[...] = stressed

    # ---- robustness critic, run once over all scenarios ----
    # critic(concat([x, stressed])) == x @ W1[:D] + stressed @ W1[D:] + b1 ...
    xc1 = _k4_matmul(x, c_w1a)                                                      # [B, H]
    xc1_rep = jnp.concatenate([xc1, xc1, xc1, xc1], axis=0)                         # [4B, H]
    c1 = jnp.maximum(xc1_rep + _k4_matmul(stressed, c_w1b) + c_b1, 0.0)             # [4B, H]
    c2 = jnp.maximum(
        jnp.dot(c1, c_w2, preferred_element_type=jnp.float32) + c_b2, 0.0)          # [4B, H2]
    # N=1 output layer as VPU multiply + lane reduction (no MXU round-trip)
    score = jax.nn.sigmoid(jnp.sum(c2 * c_w3t, axis=-1, keepdims=True) + c_b3)      # [4B, 1]
    scores_ref[...] = score


def init_params(key):
    """Deterministic PyTorch-Linear-style init: U(-1/sqrt(fan_in), 1/sqrt(fan_in))."""
    def linear(key, fan_in, fan_out):
        kw, kb = jax.random.split(key)
        bound = 1.0 / (fan_in ** 0.5)
        w = jax.random.uniform(kw, (fan_in, fan_out), jnp.float32, -bound, bound)
        b = jax.random.uniform(kb, (1, fan_out), jnp.float32, -bound, bound)
        return w, b

    keys = jax.random.split(key, 6)
    g_w1, g_b1 = linear(keys[0], D, H)            # scenario_generator: D->H
    g_w2, g_b2 = linear(keys[1], H, H)            # H->H
    g_w3, g_b3 = linear(keys[2], H, D)            # H->D
    c_w1, c_b1 = linear(keys[3], 2 * D, H)        # robustness_critic: 2D->H
    c_w2, c_b2 = linear(keys[4], H, H2)           # H->H2
    c_w3, c_b3 = linear(keys[5], H2, 1)           # H2->1
    # split critic first-layer weight so the kernel avoids an in-kernel concat
    c_w1a, c_w1b = c_w1[:D, :], c_w1[D:, :]
    return dict(g_w1=g_w1, g_b1=g_b1, g_w2=g_w2, g_b2=g_b2, g_w3=g_w3, g_b3=g_b3,
                c_w1a=c_w1a, c_w1b=c_w1b, c_b1=c_b1,
                c_w2=c_w2, c_b2=c_b2, c_w3=c_w3, c_b3=c_b3)


def pack_params(params):
    """Pack all weights/biases + pre-scaled amplifiers into one f32 [SLAB_ROWS, 32] slab."""
    slab = np.zeros((SLAB_ROWS, SLAB_COLS), np.float32)

    def put(row, a):
        a = np.asarray(a, np.float32)
        slab[row:row + a.shape[0], 0:a.shape[1]] = a

    put(R_G_W1, params["g_w1"]);   put(R_G_B1, params["g_b1"])
    put(R_G_W2, params["g_w2"]);   put(R_G_B2, params["g_b2"])
    put(R_G_W3, params["g_w3"]);   put(R_G_B3, params["g_b3"])
    put(R_C_W1A, params["c_w1a"]); put(R_C_W1B, params["c_w1b"]); put(R_C_B1, params["c_b1"])
    put(R_C_W2, params["c_w2"]);   put(R_C_B2, params["c_b2"])
    put(R_C_W3T, np.asarray(params["c_w3"]).T)    # [1, H2]
    put(R_C_B3, params["c_b3"])                   # [1, 1]
    put(R_AMPS, np.repeat(AMPS * 0.1, B, axis=0)) # [4B, D], 0.1 folded in at pack time
    return jnp.asarray(slab)


def adversarial_robustness_forward(base_input, weight_slab):
    """Returns (stress_scenarios: dict[name -> [B,D]], robustness_scores: dict[name -> [B,1]])."""
    stressed_flat, scores_flat = pl.pallas_call(
        _adv_kernel,
        out_shape=(jax.ShapeDtypeStruct((NUM_S * B, D), jnp.float32),
                   jax.ShapeDtypeStruct((NUM_S * B, 1), jnp.float32)),
        in_specs=[pl.BlockSpec(memory_space=pltpu.VMEM),
                  pl.BlockSpec(memory_space=pltpu.VMEM)],
        out_specs=(pl.BlockSpec(memory_space=pltpu.VMEM),
                   pl.BlockSpec(memory_space=pltpu.VMEM)),
        cost_estimate=pl.CostEstimate(flops=_FLOPS, transcendentals=_TRANS,
                                      bytes_accessed=_BYTES),
    )(base_input, weight_slab)

    stressed_all = stressed_flat.reshape(NUM_S, B, D)
    scores_all = scores_flat.reshape(NUM_S, B, 1)
    stress_scenarios = {name: stressed_all[i] for i, name in enumerate(SCENARIOS)}
    robustness_scores = {name: scores_all[i] for i, name in enumerate(SCENARIOS)}
    return stress_scenarios, robustness_scores


def _reference_forward(x, p):
    """Pure-JAX reference mirroring the PyTorch module."""
    relu = lambda v: jnp.maximum(v, 0.0)
    amps = jnp.asarray(AMPS)
    h1 = relu(x @ p["g_w1"] + p["g_b1"])
    h2 = relu(h1 @ p["g_w2"] + p["g_b2"])
    pert = jnp.tanh(h2 @ p["g_w3"] + p["g_b3"])
    c_w1 = jnp.concatenate([p["c_w1a"], p["c_w1b"]], axis=0)
    out_s, out_r = {}, {}
    for i, name in enumerate(SCENARIOS):
        stressed = x + (pert * amps[i][None, :]) * 0.1
        cat = jnp.concatenate([x, stressed], axis=-1)
        c1 = relu(cat @ c_w1 + p["c_b1"])
        c2 = relu(c1 @ p["c_w2"] + p["c_b2"])
        out_s[name] = stressed
        out_r[name] = jax.nn.sigmoid(c2 @ p["c_w3"] + p["c_b3"])
    return out_s, out_r


if __name__ == "__main__":
    key = jax.random.PRNGKey(0)
    k_x, k_p = jax.random.split(key)
    x = jax.random.normal(k_x, (B, D), dtype=jnp.float32)
    params = init_params(k_p)
    slab = pack_params(params)

    stress, scores = adversarial_robustness_forward(x, slab)
    jax.block_until_ready(stress)
    jax.block_until_ready(scores)

    ref_stress, ref_scores = _reference_forward(x, params)
    for name in SCENARIOS:
        assert jnp.allclose(stress[name], ref_stress[name], atol=1e-5), name
        assert jnp.allclose(scores[name], ref_scores[name], atol=1e-5), name

    print("KERNEL_OK")
</pallas_src>

<mosaic_0001>
module attributes {stable_mosaic.version = 11 : i64} {
  func.func @_adv_kernel(%arg0: memref<8x4xf32, #tpu.memory_space<vmem>>, %arg1: memref<208x32xf32, #tpu.memory_space<vmem>>, %arg2: memref<32x4xf32, #tpu.memory_space<vmem>>, %arg3: memref<32x1xf32, #tpu.memory_space<vmem>>) attributes {dimension_semantics = [], scalar_prefetch = 0 : i64, scratch_operands = 0 : i64, tpu.core_type = #tpu.core_type<tc>} {
    %c0 = arith.constant 0 : index
    %c0_0 = arith.constant 0 : index
    %0 = vector.load %arg0[%c0, %c0_0] : memref<8x4xf32, #tpu.memory_space<vmem>>, vector<8x4xf32>
    %c0_1 = arith.constant 0 : index
    %c0_2 = arith.constant 0 : index
    %1 = vector.load %arg1[%c0_1, %c0_2] : memref<208x32xf32, #tpu.memory_space<vmem>>, vector<4x32xf32>
    %c8 = arith.constant 8 : index
    %c0_3 = arith.constant 0 : index
    %2 = vector.load %arg1[%c8, %c0_3] : memref<208x32xf32, #tpu.memory_space<vmem>>, vector<1x32xf32>
    %c16 = arith.constant 16 : index
    %c0_4 = arith.constant 0 : index
    %3 = vector.load %arg1[%c16, %c0_4] : memref<208x32xf32, #tpu.memory_space<vmem>>, vector<32x32xf32>
    %c48 = arith.constant 48 : index
    %c0_5 = arith.constant 0 : index
    %4 = vector.load %arg1[%c48, %c0_5] : memref<208x32xf32, #tpu.memory_space<vmem>>, vector<1x32xf32>
    %c56 = arith.constant 56 : index
    %c0_6 = arith.constant 0 : index
    %5 = vector.load %arg1[%c56, %c0_6] : memref<208x32xf32, #tpu.memory_space<vmem>>, vector<32x4xf32>
    %c88 = arith.constant 88 : index
    %c0_7 = arith.constant 0 : index
    %6 = vector.load %arg1[%c88, %c0_7] : memref<208x32xf32, #tpu.memory_space<vmem>>, vector<1x4xf32>
    %c96 = arith.constant 96 : index
    %c0_8 = arith.constant 0 : index
    %7 = vector.load %arg1[%c96, %c0_8] : memref<208x32xf32, #tpu.memory_space<vmem>>, vector<4x32xf32>
    %c104 = arith.constant 104 : index
    %c0_9 = arith.constant 0 : index
    %8 = vector.load %arg1[%c104, %c0_9] : memref<208x32xf32, #tpu.memory_space<vmem>>, vector<4x32xf32>
    %c112 = arith.constant 112 : index
    %c0_10 = arith.constant 0 : index
    %9 = vector.load %arg1[%c112, %c0_10] : memref<208x32xf32, #tpu.memory_space<vmem>>, vector<1x32xf32>
    %c120 = arith.constant 120 : index
    %c0_11 = arith.constant 0 : index
    %10 = vector.load %arg1[%c120, %c0_11] : memref<208x32xf32, #tpu.memory_space<vmem>>, vector<32x16xf32>
    %c152 = arith.constant 152 : index
    %c0_12 = arith.constant 0 : index
    %11 = vector.load %arg1[%c152, %c0_12] : memref<208x32xf32, #tpu.memory_space<vmem>>, vector<1x16xf32>
    %c160 = arith.constant 160 : index
    %c0_13 = arith.constant 0 : index
    %12 = vector.load %arg1[%c160, %c0_13] : memref<208x32xf32, #tpu.memory_space<vmem>>, vector<1x16xf32>
    %c168 = arith.constant 168 : index
    %c0_14 = arith.constant 0 : index
    %13 = vector.load %arg1[%c168, %c0_14] : memref<208x32xf32, #tpu.memory_space<vmem>>, vector<1x1xf32>
    %c176 = arith.constant 176 : index
    %c0_15 = arith.constant 0 : index
    %14 = vector.load %arg1[%c176, %c0_15] : memref<208x32xf32, #tpu.memory_space<vmem>>, vector<32x4xf32>
    %15 = vector.extract_strided_slice %0 {offsets = [0, 0], sizes = [8, 1], strides = [1, 1]} : vector<8x4xf32> to vector<8x1xf32>
    %16 = vector.extract_strided_slice %1 {offsets = [0, 0], sizes = [1, 32], strides = [1, 1]} : vector<4x32xf32> to vector<1x32xf32>
    %17 = vector.broadcast %15 : vector<8x1xf32> to vector<8x32xf32>
    %18 = vector.broadcast %16 : vector<1x32xf32> to vector<8x32xf32>
    %19 = arith.mulf %17, %18 : vector<8x32xf32>
    %20 = vector.extract_strided_slice %0 {offsets = [0, 1], sizes = [8, 1], strides = [1, 1]} : vector<8x4xf32> to vector<8x1xf32>
    %21 = vector.extract_strided_slice %1 {offsets = [1, 0], sizes = [1, 32], strides = [1, 1]} : vector<4x32xf32> to vector<1x32xf32>
    %22 = vector.broadcast %20 : vector<8x1xf32> to vector<8x32xf32>
    %23 = vector.broadcast %21 : vector<1x32xf32> to vector<8x32xf32>
    %24 = arith.mulf %22, %23 : vector<8x32xf32>
    %25 = arith.addf %19, %24 : vector<8x32xf32>
    %26 = vector.extract_strided_slice %0 {offsets = [0, 2], sizes = [8, 1], strides = [1, 1]} : vector<8x4xf32> to vector<8x1xf32>
    %27 = vector.extract_strided_slice %1 {offsets = [2, 0], sizes = [1, 32], strides = [1, 1]} : vector<4x32xf32> to vector<1x32xf32>
    %28 = vector.broadcast %26 : vector<8x1xf32> to vector<8x32xf32>
    %29 = vector.broadcast %27 : vector<1x32xf32> to vector<8x32xf32>
    %30 = arith.mulf %28, %29 : vector<8x32xf32>
    %31 = arith.addf %25, %30 : vector<8x32xf32>
    %32 = vector.extract_strided_slice %0 {offsets = [0, 3], sizes = [8, 1], strides = [1, 1]} : vector<8x4xf32> to vector<8x1xf32>
    %33 = vector.extract_strided_slice %1 {offsets = [3, 0], sizes = [1, 32], strides = [1, 1]} : vector<4x32xf32> to vector<1x32xf32>
    %34 = vector.broadcast %32 : vector<8x1xf32> to vector<8x32xf32>
    %35 = vector.broadcast %33 : vector<1x32xf32> to vector<8x32xf32>
    %36 = arith.mulf %34, %35 : vector<8x32xf32>
    %37 = arith.addf %31, %36 : vector<8x32xf32>
    %38 = vector.broadcast %2 : vector<1x32xf32> to vector<8x32xf32>
    %39 = arith.addf %37, %38 : vector<8x32xf32>
    %cst = arith.constant 0.000000e+00 : f32
    %40 = vector.broadcast %cst : f32 to vector<8x32xf32>
    %41 = arith.maximumf %39, %40 : vector<8x32xf32>
    %cst_16 = arith.constant dense<0.000000e+00> : vector<8x32xf32>
    %42 = tpu.matmul %41, %3, %cst_16 {dimension_numbers = #tpu.dot_dimension_numbers<[1], [0], [0], [1], [0, 0, 1, 1], [], []>} : vector<8x32xf32>, vector<32x32xf32>, vector<8x32xf32> -> vector<8x32xf32>
    %43 = vector.broadcast %4 : vector<1x32xf32> to vector<8x32xf32>
    %44 = arith.addf %42, %43 : vector<8x32xf32>
    %cst_17 = arith.constant 0.000000e+00 : f32
    %45 = vector.broadcast %cst_17 : f32 to vector<8x32xf32>
    %46 = arith.maximumf %44, %45 : vector<8x32xf32>
    %cst_18 = arith.constant dense<0.000000e+00> : vector<8x4xf32>
    %47 = tpu.matmul %46, %5, %cst_18 {dimension_numbers = #tpu.dot_dimension_numbers<[1], [0], [0], [1], [0, 0, 1, 1], [], []>} : vector<8x32xf32>, vector<32x4xf32>, vector<8x4xf32> -> vector<8x4xf32>
    %48 = vector.broadcast %6 : vector<1x4xf32> to vector<8x4xf32>
    %49 = arith.addf %47, %48 : vector<8x4xf32>
    %50 = math.tanh %49 : vector<8x4xf32>
    %51 = tpu.concatenate %0, %0, %0, %0 in 0 : vector<8x4xf32>, vector<8x4xf32>, vector<8x4xf32>, vector<8x4xf32> -> vector<32x4xf32>
    %52 = tpu.concatenate %50, %50, %50, %50 in 0 : vector<8x4xf32>, vector<8x4xf32>, vector<8x4xf32>, vector<8x4xf32> -> vector<32x4xf32>
    %53 = arith.mulf %52, %14 : vector<32x4xf32>
    %54 = arith.addf %51, %53 : vector<32x4xf32>
    %c0_19 = arith.constant 0 : index
    %c0_20 = arith.constant 0 : index
    %55 = vector.load %arg2[%c0_19, %c0_20] : memref<32x4xf32, #tpu.memory_space<vmem>>, vector<32x4xf32>
    tpu.vector_store %arg2[%c0_19, %c0_20], %54 {strides = array<i32>} : memref<32x4xf32, #tpu.memory_space<vmem>>, vector<32x4xf32>,
    %56 = vector.extract_strided_slice %0 {offsets = [0, 0], sizes = [8, 1], strides = [1, 1]} : vector<8x4xf32> to vector<8x1xf32>
    %57 = vector.extract_strided_slice %7 {offsets = [0, 0], sizes = [1, 32], strides = [1, 1]} : vector<4x32xf32> to vector<1x32xf32>
    %58 = vector.broadcast %56 : vector<8x1xf32> to vector<8x32xf32>
    %59 = vector.broadcast %57 : vector<1x32xf32> to vector<8x32xf32>
    %60 = arith.mulf %58, %59 : vector<8x32xf32>
    %61 = vector.extract_strided_slice %0 {offsets = [0, 1], sizes = [8, 1], strides = [1, 1]} : vector<8x4xf32> to vector<8x1xf32>
    %62 = vector.extract_strided_slice %7 {offsets = [1, 0], sizes = [1, 32], strides = [1, 1]} : vector<4x32xf32> to vector<1x32xf32>
    %63 = vector.broadcast %61 : vector<8x1xf32> to vector<8x32xf32>
    %64 = vector.broadcast %62 : vector<1x32xf32> to vector<8x32xf32>
    %65 = arith.mulf %63, %64 : vector<8x32xf32>
    %66 = arith.addf %60, %65 : vector<8x32xf32>
    %67 = vector.extract_strided_slice %0 {offsets = [0, 2], sizes = [8, 1], strides = [1, 1]} : vector<8x4xf32> to vector<8x1xf32>
    %68 = vector.extract_strided_slice %7 {offsets = [2, 0], sizes = [1, 32], strides = [1, 1]} : vector<4x32xf32> to vector<1x32xf32>
    %69 = vector.broadcast %67 : vector<8x1xf32> to vector<8x32xf32>
    %70 = vector.broadcast %68 : vector<1x32xf32> to vector<8x32xf32>
    %71 = arith.mulf %69, %70 : vector<8x32xf32>
    %72 = arith.addf %66, %71 : vector<8x32xf32>
    %73 = vector.extract_strided_slice %0 {offsets = [0, 3], sizes = [8, 1], strides = [1, 1]} : vector<8x4xf32> to vector<8x1xf32>
    %74 = vector.extract_strided_slice %7 {offsets = [3, 0], sizes = [1, 32], strides = [1, 1]} : vector<4x32xf32> to vector<1x32xf32>
    %75 = vector.broadcast %73 : vector<8x1xf32> to vector<8x32xf32>
    %76 = vector.broadcast %74 : vector<1x32xf32> to vector<8x32xf32>
    %77 = arith.mulf %75, %76 : vector<8x32xf32>
    %78 = arith.addf %72, %77 : vector<8x32xf32>
    %79 = tpu.concatenate %78, %78, %78, %78 in 0 : vector<8x32xf32>, vector<8x32xf32>, vector<8x32xf32>, vector<8x32xf32> -> vector<32x32xf32>
    %80 = vector.extract_strided_slice %54 {offsets = [0, 0], sizes = [32, 1], strides = [1, 1]} : vector<32x4xf32> to vector<32x1xf32>
    %81 = vector.extract_strided_slice %8 {offsets = [0, 0], sizes = [1, 32], strides = [1, 1]} : vector<4x32xf32> to vector<1x32xf32>
    %82 = vector.broadcast %80 : vector<32x1xf32> to vector<32x32xf32>
    %83 = vector.broadcast %81 : vector<1x32xf32> to vector<32x32xf32>
    %84 = arith.mulf %82, %83 : vector<32x32xf32>
    %85 = vector.extract_strided_slice %54 {offsets = [0, 1], sizes = [32, 1], strides = [1, 1]} : vector<32x4xf32> to vector<32x1xf32>
    %86 = vector.extract_strided_slice %8 {offsets = [1, 0], sizes = [1, 32], strides = [1, 1]} : vector<4x32xf32> to vector<1x32xf32>
    %87 = vector.broadcast %85 : vector<32x1xf32> to vector<32x32xf32>
    %88 = vector.broadcast %86 : vector<1x32xf32> to vector<32x32xf32>
    %89 = arith.mulf %87, %88 : vector<32x32xf32>
    %90 = arith.addf %84, %89 : vector<32x32xf32>
    %91 = vector.extract_strided_slice %54 {offsets = [0, 2], sizes = [32, 1], strides = [1, 1]} : vector<32x4xf32> to vector<32x1xf32>
    %92 = vector.extract_strided_slice %8 {offsets = [2, 0], sizes = [1, 32], strides = [1, 1]} : vector<4x32xf32> to vector<1x32xf32>
    %93 = vector.broadcast %91 : vector<32x1xf32> to vector<32x32xf32>
    %94 = vector.broadcast %92 : vector<1x32xf32> to vector<32x32xf32>
    %95 = arith.mulf %93, %94 : vector<32x32xf32>
    %96 = arith.addf %90, %95 : vector<32x32xf32>
    %97 = vector.extract_strided_slice %54 {offsets = [0, 3], sizes = [32, 1], strides = [1, 1]} : vector<32x4xf32> to vector<32x1xf32>
    %98 = vector.extract_strided_slice %8 {offsets = [3, 0], sizes = [1, 32], strides = [1, 1]} : vector<4x32xf32> to vector<1x32xf32>
    %99 = vector.broadcast %97 : vector<32x1xf32> to vector<32x32xf32>
    %100 = vector.broadcast %98 : vector<1x32xf32> to vector<32x32xf32>
    %101 = arith.mulf %99, %100 : vector<32x32xf32>
    %102 = arith.addf %96, %101 : vector<32x32xf32>
    %103 = arith.addf %79, %102 : vector<32x32xf32>
    %104 = vector.broadcast %9 : vector<1x32xf32> to vector<32x32xf32>
    %105 = arith.addf %103, %104 : vector<32x32xf32>
    %cst_21 = arith.constant 0.000000e+00 : f32
    %106 = vector.broadcast %cst_21 : f32 to vector<32x32xf32>
    %107 = arith.maximumf %105, %106 : vector<32x32xf32>
    %cst_22 = arith.constant dense<0.000000e+00> : vector<32x16xf32>
    %108 = tpu.matmul %107, %10, %cst_22 {dimension_numbers = #tpu.dot_dimension_numbers<[1], [0], [0], [1], [0, 0, 1, 1], [], []>} : vector<32x32xf32>, vector<32x16xf32>, vector<32x16xf32> -> vector<32x16xf32>
    %109 = vector.broadcast %11 : vector<1x16xf32> to vector<32x16xf32>
    %110 = arith.addf %108, %109 : vector<32x16xf32>
    %cst_23 = arith.constant 0.000000e+00 : f32
    %111 = vector.broadcast %cst_23 : f32 to vector<32x16xf32>
    %112 = arith.maximumf %110, %111 : vector<32x16xf32>
    %113 = vector.broadcast %12 : vector<1x16xf32> to vector<32x16xf32>
    %114 = arith.mulf %112, %113 : vector<32x16xf32>
    %cst_24 = arith.constant dense<0.000000e+00> : vector<32xf32>
    %115 = vector.multi_reduction <add>, %114, %cst_24 [1] : vector<32x16xf32> to vector<32xf32>
    %116 = vector.shape_cast %115 : vector<32xf32> to vector<32x1xf32>
    %117 = vector.broadcast %13 : vector<1x1xf32> to vector<32x1xf32>
    %118 = arith.addf %116, %117 : vector<32x1xf32>
    %119 = arith.negf %118 : vector<32x1xf32>
    %120 = math.exp %119 : vector<32x1xf32>
    %cst_25 = arith.constant 1.000000e+00 : f32
    %121 = vector.broadcast %cst_25 : f32 to vector<32x1xf32>
    %122 = arith.addf %121, %120 : vector<32x1xf32>
    %123 = arith.divf %121, %122 : vector<32x1xf32>
    %c0_26 = arith.constant 0 : index
    %c0_27 = arith.constant 0 : index
    %124 = vector.load %arg3[%c0_26, %c0_27] : memref<32x1xf32, #tpu.memory_space<vmem>>, vector<32x1xf32>
    tpu.vector_store %arg3[%c0_26, %c0_27], %123 {strides = array<i32>} : memref<32x1xf32, #tpu.memory_space<vmem>>, vector<32x1xf32>,
    return
  }
}

</mosaic_0001>

<llo_original>
// kernel: tpu_custom_call.1
$region0: #{tpu_custom_call.1}
  #allocation0 [shape = 'u32[]', space=smem, size = 0x4, offset = 0x4, fixed_abs, tag = 'smem constant byte address 0x4 - core index']
  #allocation1 [shape = 'u32[144,128]{1,0:T(1,128)}', space=vmem, size = 0x12000, scoped, tag = 'internal scratch']
  %s0 = inlined_call_operand.vmem [shape: f32[8,4], index: 0, kind: input, shape index: {}]
  %s1 = inlined_call_operand.vmem [shape: f32[208,32], index: 1, kind: input, shape index: {}]
  %s2 = inlined_call_operand.vmem [shape: f32[32,4], index: 2, kind: output, shape index: {0}]
  %s3 = inlined_call_operand.vmem [shape: f32[32,1], index: 3, kind: output, shape index: {1}]
  %4 = xla_tuple %s2, %s3
  %s5 = sld [smem:[#allocation0]]
  $region26: #{tpu_custom_call.1} parent=0
    _
  %s7 = ssub.s32 1, %s5
  %s8 = scalar_select 0, %s7, %s5
  // Predicated region
  $region2: #{tpu_custom_call.1} parent=0 // pred_check
    _
  $region3: #{tpu_custom_call.1} parent=0 // pred_check_branch
    %10 = sbr.rel (0) target = $region5
  $region4: #{tpu_custom_call.1} parent=0 // pred_region
    _
  $region5: #{tpu_custom_call.1} parent=0 // pred_fallthru
    _
  // Predicated region
  $region6: #{tpu_custom_call.1} parent=0 // pred_check
    _
  $region7: #{tpu_custom_call.1} parent=0 // pred_check_branch
    %12 = sbr.rel (0) target = $region9
  $region8: #{tpu_custom_call.1} parent=0 // pred_region
    _
  $region9: #{tpu_custom_call.1} parent=0 // pred_fallthru
    _
  %v13 = vld [vmem:[%s0] sm:$0xff]
  %v14 = vld [vmem:[%s1] sm:$0xf]
  %v15 = vld [vmem:[%s1 + $0x8] sm:$0x1]
  %v16 = vld [vmem:[%s1 + $0x10] sm:$0xff]
  %v17 = vld [vmem:[%s1 + $0x18] sm:$0xff]
  %v18 = vld [vmem:[%s1 + $0x20] sm:$0xff]
  %v19 = vld [vmem:[%s1 + $0x28] sm:$0xff]
  %v20 = vld [vmem:[%s1 + $0x30] sm:$0x1]
  %v21 = vld [vmem:[%s1 + $0x38] sm:$0xff]
  %v22 = vld [vmem:[%s1 + $0x40] sm:$0xff]
  %v23 = vld [vmem:[%s1 + $0x48] sm:$0xff]
  %v24 = vld [vmem:[%s1 + $0x50] sm:$0xff]
  %v25 = vld [vmem:[%s1 + $0x58] sm:$0x1]
  %v26 = vld [vmem:[%s1 + $0x60] sm:$0xf]
  %v27 = vld [vmem:[%s1 + $0x68] sm:$0xf]
  %v28 = vld [vmem:[%s1 + $0x70] sm:$0x1]
  %v29 = vld [vmem:[%s1 + $0x78] sm:$0xff]
  %v30 = vld [vmem:[%s1 + $0x80] sm:$0xff]
  %v31 = vld [vmem:[%s1 + $0x88] sm:$0xff]
  %v32 = vld [vmem:[%s1 + $0x90] sm:$0xff]
  %v33 = vld [vmem:[%s1 + $0x98] sm:$0x1]
  %v34 = vld [vmem:[%s1 + $0xa0] sm:$0x1]
  %v35 = vld [vmem:[%s1 + $0xa8] sm:$0x1]
  %v36 = vld [vmem:[%s1 + $0xb0] sm:$0xff]
  %v37 = vld [vmem:[%s1 + $0xb8] sm:$0xff]
  %v38 = vld [vmem:[%s1 + $0xc0] sm:$0xff]
  %v39 = vld [vmem:[%s1 + $0xc8] sm:$0xff]
  %41 = vset.pattern.permute.xlu0 0
  %42 = vperm.xlu0 %41, %v13
  %v43 = vpop.permute.xlu0 %42
  %v45 = vlaneseq
  %v46 = vshrl.u32 %v45, 7
  %v47 = vsub.s32 0, %v46
  %v48 = vrot.slane %v14, %v47
  %v49 = vmul.f32 %v43, %v48
  %50 = vset.pattern.permute.xlu0 1
  %51 = vperm.xlu0 %50, %v13
  %v52 = vpop.permute.xlu0 %51
  %v54 = vlaneseq
  %v55 = vshrl.u32 %v54, 7
  %v56 = vsub.s32 1, %v55
  %v57 = vrot.slane %v14, %v56
  %v58 = vmul.f32 %v52, %v57
  %v59 = vadd.f32 %v49, %v58
  %60 = vset.pattern.permute.xlu0 2
  %61 = vperm.xlu0 %60, %v13
  %v62 = vpop.permute.xlu0 %61
  %v64 = vlaneseq
  %v65 = vshrl.u32 %v64, 7
  %v66 = vsub.s32 2, %v65
  %v67 = vrot.slane %v14, %v66
  %v68 = vmul.f32 %v62, %v67
  %v69 = vadd.f32 %v59, %v68
  %70 = vset.pattern.permute.xlu0 3
  %71 = vperm.xlu0 %70, %v13
  %v72 = vpop.permute.xlu0 %71
  %v74 = vlaneseq
  %v75 = vshrl.u32 %v74, 7
  %v76 = vsub.s32 3, %v75
  %v77 = vrot.slane %v14, %v76
  %v78 = vmul.f32 %v72, %v77
  %v79 = vadd.f32 %v69, %v78
  %v80 = vlaneseq
  %v81 = vshrl.u32 %v80, 7
  %v82 = vsub.s32 0, %v81
  %v83 = vrot.slane %v15, %v82
  %v84 = vadd.f32 %v79, %v83
  %v85 = vmax.f32 %v84, 0.0
  %v86 = vlaneseq
  %v87 = vshrl.u32 %v86, 7
  %v88 = vsub.s32 0, %v87
  %v89 = vrot.slane %v20, %v88
  %vm90 = vcmask 261120
  %v92 = vsel %vm90, %v85, 0
  %94 = vmatprep.subr.mxu0 0.0
  %95 = vmatpush1.msra.mxu0 0.0
  %96 = vmatprep.subr.mxu0 0.0
  %97 = vmatpush1.msra.mxu0 0.0
  %98 = vmatprep.subr.mxu0 0.0
  %99 = vmatpush1.msra.mxu0 0.0
  %100 = vmatprep.subr.mxu0 0.0
  %101 = vmatpush1.msra.mxu0 0.0
  %102 = vmatprep.subr.mxu0 0.0
  %103 = vmatpush1.msra.mxu0 0.0
  %104 = vmatprep.subr.mxu0 0.0
  %105 = vmatpush1.msra.mxu0 0.0
  %106 = vmatprep.subr.mxu0 0.0
  %107 = vmatpush1.msra.mxu0 0.0
  %108 = vmatprep.subr.mxu0 0.0
  %109 = vmatpush1.msra.mxu0 0.0
  %110 = vmatprep.subr.mxu0 0.0
  %111 = vmatpush1.msra.mxu0 0.0
  %112 = vmatprep.subr.mxu0 0.0
  %113 = vmatpush1.msra.mxu0 0.0
  %114 = vmatprep.subr.mxu0 0.0
  %115 = vmatpush1.msra.mxu0 0.0
  %116 = vmatprep.subr.mxu0 0.0
  %117 = vmatpush1.msra.mxu0 0.0
  %118 = vmatprep.subr.mxu0 0.0
  %119 = vmatpush1.msra.mxu0 %v19
  %120 = vmatprep.subr.mxu0 0.0
  %121 = vmatpush1.msra.mxu0 %v18
  %122 = vmatprep.subr.mxu0 0.0
  %123 = vmatpush1.msra.mxu0 %v17
  %124 = vmatprep.subr.mxu0 0.0
  %125 = vmatpush1.msra.mxu0 %v16
  %126 = vmatprep.subr.mxu0 0.0
  %127 = vmatpush2.msra.mxu0 0.0
  %128 = vmatprep.subr.mxu0 0.0
  %129 = vmatpush2.msra.mxu0 0.0
  %130 = vmatprep.subr.mxu0 0.0
  %131 = vmatpush2.msra.mxu0 0.0
  %132 = vmatprep.subr.mxu0 0.0
  %133 = vmatpush2.msra.mxu0 0.0
  %134 = vmatprep.subr.mxu0 0.0
  %135 = vmatpush2.msra.mxu0 0.0
  %136 = vmatprep.subr.mxu0 0.0
  %137 = vmatpush2.msra.mxu0 0.0
  %138 = vmatprep.subr.mxu0 0.0
  %139 = vmatpush2.msra.mxu0 0.0
  %140 = vmatprep.subr.mxu0 0.0
  %141 = vmatpush2.msra.mxu0 0.0
  %142 = vmatprep.subr.mxu0 0.0
  %143 = vmatpush2.msra.mxu0 0.0
  %144 = vmatprep.subr.mxu0 0.0
  %145 = vmatpush2.msra.mxu0 0.0
  %146 = vmatprep.subr.mxu0 0.0
  %147 = vmatpush2.msra.mxu0 0.0
  %148 = vmatprep.subr.mxu0 0.0
  %149 = vmatpush2.msra.mxu0 0.0
  %150 = vmatprep.subr.mxu0 0.0
  %151 = vmatpush2.msra.mxu0 0.0
  %152 = vmatprep.subr.mxu0 0.0
  %153 = vmatpush2.msra.mxu0 0.0
  %154 = vmatprep.subr.mxu0 0.0
  %155 = vmatpush2.msra.mxu0 0.0
  %156 = vmatprep.subr.mxu0 0.0
  %157 = vmatpush2.msra.mxu0 0.0
  %158 = vmatprep.mubr.f32.mxu0 0.0
  %159 = vmatmul.mubr.f32.gmra.mxu0 %v92
  %v160 = vpop.f32.mrf.mxu0
  %v161 = vadd.f32 %v89, %v160
  %v162 = vpop.f32.mrf.mxu0
  %163 = vdwg.mxu0
  %v164 = vmax.f32 %v161, 0.0
  %v165 = vlaneseq
  %v166 = vshrl.u32 %v165, 7
  %v167 = vsub.s32 0, %v166
  %v168 = vrot.slane %v25, %v167
  %v170 = vsel %vm90, %v164, 0
  %172 = vmatprep.subr.mxu0 0.0
  %173 = vmatpush1.msra.mxu0 0.0
  %174 = vmatprep.subr.mxu0 0.0
  %175 = vmatpush1.msra.mxu0 0.0
  %176 = vmatprep.subr.mxu0 0.0
  %177 = vmatpush1.msra.mxu0 0.0
  %178 = vmatprep.subr.mxu0 0.0
  %179 = vmatpush1.msra.mxu0 0.0
  %180 = vmatprep.subr.mxu0 0.0
  %181 = vmatpush1.msra.mxu0 0.0
  %182 = vmatprep.subr.mxu0 0.0
  %183 = vmatpush1.msra.mxu0 0.0
  %184 = vmatprep.subr.mxu0 0.0
  %185 = vmatpush1.msra.mxu0 0.0
  %186 = vmatprep.subr.mxu0 0.0
  %187 = vmatpush1.msra.mxu0 0.0
  %188 = vmatprep.subr.mxu0 0.0
  %189 = vmatpush1.msra.mxu0 0.0
  %190 = vmatprep.subr.mxu0 0.0
  %191 = vmatpush1.msra.mxu0 0.0
  %192 = vmatprep.subr.mxu0 0.0
  %193 = vmatpush1.msra.mxu0 0.0
  %194 = vmatprep.subr.mxu0 0.0
  %195 = vmatpush1.msra.mxu0 0.0
  %196 = vmatprep.subr.mxu0 0.0
  %197 = vmatpush1.msra.mxu0 %v24
  %198 = vmatprep.subr.mxu0 0.0
  %199 = vmatpush1.msra.mxu0 %v23
  %200 = vmatprep.subr.mxu0 0.0
  %201 = vmatpush1.msra.mxu0 %v22
  %202 = vmatprep.subr.mxu0 0.0
  %203 = vmatpush1.msra.mxu0 %v21
  %204 = vmatprep.subr.mxu0 0.0
  %205 = vmatpush2.msra.mxu0 0.0
  %206 = vmatprep.subr.mxu0 0.0
  %207 = vmatpush2.msra.mxu0 0.0
  %208 = vmatprep.subr.mxu0 0.0
  %209 = vmatpush2.msra.mxu0 0.0
  %210 = vmatprep.subr.mxu0 0.0
  %211 = vmatpush2.msra.mxu0 0.0
  %212 = vmatprep.subr.mxu0 0.0
  %213 = vmatpush2.msra.mxu0 0.0
  %214 = vmatprep.subr.mxu0 0.0
  %215 = vmatpush2.msra.mxu0 0.0
  %216 = vmatprep.subr.mxu0 0.0
  %217 = vmatpush2.msra.mxu0 0.0
  %218 = vmatprep.subr.mxu0 0.0
  %219 = vmatpush2.msra.mxu0 0.0
  %220 = vmatprep.subr.mxu0 0.0
  %221 = vmatpush2.msra.mxu0 0.0
  %222 = vmatprep.subr.mxu0 0.0
  %223 = vmatpush2.msra.mxu0 0.0
  %224 = vmatprep.subr.mxu0 0.0
  %225 = vmatpush2.msra.mxu0 0.0
  %226 = vmatprep.subr.mxu0 0.0
  %227 = vmatpush2.msra.mxu0 0.0
  %228 = vmatprep.subr.mxu0 0.0
  %229 = vmatpush2.msra.mxu0 0.0
  %230 = vmatprep.subr.mxu0 0.0
  %231 = vmatpush2.msra.mxu0 0.0
  %232 = vmatprep.subr.mxu0 0.0
  %233 = vmatpush2.msra.mxu0 0.0
  %234 = vmatprep.subr.mxu0 0.0
  %235 = vmatpush2.msra.mxu0 0.0
  %236 = vmatprep.mubr.f32.mxu0 0.0
  %237 = vmatmul.mubr.f32.gmra.mxu0 %v170
  %v238 = vpop.f32.mrf.mxu0
  %v239 = vadd.f32 %v168, %v238
  %v240 = vpop.f32.mrf.mxu0
  %241 = vdwg.mxu0
  %v242 = vtanh.pop %v239
  %v243 = vmul.f32 %v242, %v36
  %v244 = vmul.f32 %v242, %v37
  %v245 = vmul.f32 %v242, %v38
  %v246 = vmul.f32 %v242, %v39
  %v247 = vadd.f32 %v13, %v243
  %v248 = vadd.f32 %v13, %v244
  %v249 = vadd.f32 %v13, %v245
  %v250 = vadd.f32 %v13, %v246
  %vm251 = vcmask 31744
  %252 = vst.msk [vmem:[%s2] sm:$0xff] %vm251, %v247
  %253 = vst.msk [vmem:[%s2 + $0x8] sm:$0xff] %vm251, %v248
  %254 = vst.msk [vmem:[%s2 + $0x10] sm:$0xff] %vm251, %v249
  %255 = vst.msk [vmem:[%s2 + $0x18] sm:$0xff] %vm251, %v250
  %v256 = vlaneseq
  %v257 = vshrl.u32 %v256, 7
  %v258 = vsub.s32 0, %v257
  %v259 = vrot.slane %v26, %v258
  %v260 = vmul.f32 %v43, %v259
  %v261 = vlaneseq
  %v262 = vshrl.u32 %v261, 7
  %v263 = vsub.s32 1, %v262
  %v264 = vrot.slane %v26, %v263
  %v265 = vmul.f32 %v52, %v264
  %v266 = vadd.f32 %v260, %v265
  %v267 = vlaneseq
  %v268 = vshrl.u32 %v267, 7
  %v269 = vsub.s32 2, %v268
  %v270 = vrot.slane %v26, %v269
  %v271 = vmul.f32 %v62, %v270
  %v272 = vadd.f32 %v266, %v271
  %v273 = vlaneseq
  %v274 = vshrl.u32 %v273, 7
  %v275 = vsub.s32 3, %v274
  %v276 = vrot.slane %v26, %v275
  %v277 = vmul.f32 %v72, %v276
  %v278 = vadd.f32 %v272, %v277
  %280 = vset.pattern.permute.xlu0 0
  %281 = vperm.xlu0 %280, %v247
  %v282 = vpop.permute.xlu0 %281
  %285 = vset.pattern.permute.xlu0 0
  %286 = vperm.xlu0 %285, %v248
  %v287 = vpop.permute.xlu0 %286
  %290 = vset.pattern.permute.xlu0 0
  %291 = vperm.xlu0 %290, %v249
  %v292 = vpop.permute.xlu0 %291
  %295 = vset.pattern.permute.xlu0 0
  %296 = vperm.xlu0 %295, %v250
  %v297 = vpop.permute.xlu0 %296
  %v299 = vlaneseq
  %v300 = vshrl.u32 %v299, 7
  %v301 = vsub.s32 0, %v300
  %v302 = vrot.slane %v27, %v301
  %v303 = vmul.f32 %v282, %v302
  %v304 = vmul.f32 %v287, %v302
  %v305 = vmul.f32 %v292, %v302
  %v306 = vmul.f32 %v297, %v302
  %307 = vset.pattern.permute.xlu0 1
  %308 = vperm.xlu0 %307, %v247
  %v309 = vpop.permute.xlu0 %308
  %311 = vset.pattern.permute.xlu0 1
  %312 = vperm.xlu0 %311, %v248
  %v313 = vpop.permute.xlu0 %312
  %315 = vset.pattern.permute.xlu0 1
  %316 = vperm.xlu0 %315, %v249
  %v317 = vpop.permute.xlu0 %316
  %319 = vset.pattern.permute.xlu0 1
  %320 = vperm.xlu0 %319, %v250
  %v321 = vpop.permute.xlu0 %320
  %v323 = vlaneseq
  %v324 = vshrl.u32 %v323, 7
  %v325 = vsub.s32 1, %v324
  %v326 = vrot.slane %v27, %v325
  %v327 = vmul.f32 %v309, %v326
  %v328 = vmul.f32 %v313, %v326
  %v329 = vmul.f32 %v317, %v326
  %v330 = vmul.f32 %v321, %v326
  %v331 = vadd.f32 %v303, %v327
  %v332 = vadd.f32 %v304, %v328
  %v333 = vadd.f32 %v305, %v329
  %v334 = vadd.f32 %v306, %v330
  %335 = vset.pattern.permute.xlu0 2
  %336 = vperm.xlu0 %335, %v247
  %v337 = vpop.permute.xlu0 %336
  %339 = vset.pattern.permute.xlu0 2
  %340 = vperm.xlu0 %339, %v248
  %v341 = vpop.permute.xlu0 %340
  %343 = vset.pattern.permute.xlu0 2
  %344 = vperm.xlu0 %343, %v249
  %v345 = vpop.permute.xlu0 %344
  %347 = vset.pattern.permute.xlu0 2
  %348 = vperm.xlu0 %347, %v250
  %v349 = vpop.permute.xlu0 %348
  %v351 = vlaneseq
  %v352 = vshrl.u32 %v351, 7
  %v353 = vsub.s32 2, %v352
  %v354 = vrot.slane %v27, %v353
  %v355 = vmul.f32 %v337, %v354
  %v356 = vmul.f32 %v341, %v354
  %v357 = vmul.f32 %v345, %v354
  %v358 = vmul.f32 %v349, %v354
  %v359 = vadd.f32 %v331, %v355
  %v360 = vadd.f32 %v332, %v356
  %v361 = vadd.f32 %v333, %v357
  %v362 = vadd.f32 %v334, %v358
  %363 = vset.pattern.permute.xlu0 3
  %364 = vperm.xlu0 %363, %v247
  %v365 = vpop.permute.xlu0 %364
  %367 = vset.pattern.permute.xlu0 3
  %368 = vperm.xlu0 %367, %v248
  %v369 = vpop.permute.xlu0 %368
  %371 = vset.pattern.permute.xlu0 3
  %372 = vperm.xlu0 %371, %v249
  %v373 = vpop.permute.xlu0 %372
  %375 = vset.pattern.permute.xlu0 3
  %376 = vperm.xlu0 %375, %v250
  %v377 = vpop.permute.xlu0 %376
  %v379 = vlaneseq
  %v380 = vshrl.u32 %v379, 7
  %v381 = vsub.s32 3, %v380
  %v382 = vrot.slane %v27, %v381
  %v383 = vmul.f32 %v365, %v382
  %v384 = vmul.f32 %v369, %v382
  %v385 = vmul.f32 %v373, %v382
  %v386 = vmul.f32 %v377, %v382
  %v387 = vadd.f32 %v359, %v383
  %v388 = vadd.f32 %v360, %v384
  %v389 = vadd.f32 %v361, %v385
  %v390 = vadd.f32 %v362, %v386
  %v391 = vadd.f32 %v278, %v387
  %v392 = vadd.f32 %v278, %v388
  %v393 = vadd.f32 %v278, %v389
  %v394 = vadd.f32 %v278, %v390
  %v395 = vlaneseq
  %v396 = vshrl.u32 %v395, 7
  %v397 = vsub.s32 0, %v396
  %v398 = vrot.slane %v28, %v397
  %v399 = vadd.f32 %v391, %v398
  %v400 = vadd.f32 %v392, %v398
  %v401 = vadd.f32 %v393, %v398
  %v402 = vadd.f32 %v394, %v398
  %v403 = vmax.f32 %v399, 0.0
  %v404 = vmax.f32 %v400, 0.0
  %v405 = vmax.f32 %v401, 0.0
  %v406 = vmax.f32 %v402, 0.0
  %v407 = vlaneseq
  %v408 = vshrl.u32 %v407, 7
  %v409 = vsub.s32 0, %v408
  %v410 = vrot.slane %v33, %v409
  %v412 = vsel %vm90, %v403, 0
  %v415 = vsel %vm90, %v404, 0
  %v418 = vsel %vm90, %v405, 0
  %v421 = vsel %vm90, %v406, 0
  %423 = vmatprep.subr.mxu0 0.0
  %424 = vmatpush1.msra.mxu0 0.0
  %425 = vmatprep.subr.mxu0 0.0
  %426 = vmatpush1.msra.mxu0 0.0
  %427 = vmatprep.subr.mxu0 0.0
  %428 = vmatpush1.msra.mxu0 0.0
  %429 = vmatprep.subr.mxu0 0.0
  %430 = vmatpush1.msra.mxu0 0.0
  %431 = vmatprep.subr.mxu0 0.0
  %432 = vmatpush1.msra.mxu0 0.0
  %433 = vmatprep.subr.mxu0 0.0
  %434 = vmatpush1.msra.mxu0 0.0
  %435 = vmatprep.subr.mxu0 0.0
  %436 = vmatpush1.msra.mxu0 0.0
  %437 = vmatprep.subr.mxu0 0.0
  %438 = vmatpush1.msra.mxu0 0.0
  %439 = vmatprep.subr.mxu0 0.0
  %440 = vmatpush1.msra.mxu0 0.0
  %441 = vmatprep.subr.mxu0 0.0
  %442 = vmatpush1.msra.mxu0 0.0
  %443 = vmatprep.subr.mxu0 0.0
  %444 = vmatpush1.msra.mxu0 0.0
  %445 = vmatprep.subr.mxu0 0.0
  %446 = vmatpush1.msra.mxu0 0.0
  %447 = vmatprep.subr.mxu0 0.0
  %448 = vmatpush1.msra.mxu0 %v32
  %449 = vmatprep.subr.mxu0 0.0
  %450 = vmatpush1.msra.mxu0 %v31
  %451 = vmatprep.subr.mxu0 0.0
  %452 = vmatpush1.msra.mxu0 %v30
  %453 = vmatprep.subr.mxu0 0.0
  %454 = vmatpush1.msra.mxu0 %v29
  %455 = vmatprep.subr.mxu0 0.0
  %456 = vmatpush2.msra.mxu0 0.0
  %457 = vmatprep.subr.mxu0 0.0
  %458 = vmatpush2.msra.mxu0 0.0
  %459 = vmatprep.subr.mxu0 0.0
  %460 = vmatpush2.msra.mxu0 0.0
  %461 = vmatprep.subr.mxu0 0.0
  %462 = vmatpush2.msra.mxu0 0.0
  %463 = vmatprep.subr.mxu0 0.0
  %464 = vmatpush2.msra.mxu0 0.0
  %465 = vmatprep.subr.mxu0 0.0
  %466 = vmatpush2.msra.mxu0 0.0
  %467 = vmatprep.subr.mxu0 0.0
  %468 = vmatpush2.msra.mxu0 0.0
  %469 = vmatprep.subr.mxu0 0.0
  %470 = vmatpush2.msra.mxu0 0.0
  %471 = vmatprep.subr.mxu0 0.0
  %472 = vmatpush2.msra.mxu0 0.0
  %473 = vmatprep.subr.mxu0 0.0
  %474 = vmatpush2.msra.mxu0 0.0
  %475 = vmatprep.subr.mxu0 0.0
  %476 = vmatpush2.msra.mxu0 0.0
  %477 = vmatprep.subr.mxu0 0.0
  %478 = vmatpush2.msra.mxu0 0.0
  %479 = vmatprep.subr.mxu0 0.0
  %480 = vmatpush2.msra.mxu0 0.0
  %481 = vmatprep.subr.mxu0 0.0
  %482 = vmatpush2.msra.mxu0 0.0
  %483 = vmatprep.subr.mxu0 0.0
  %484 = vmatpush2.msra.mxu0 0.0
  %485 = vmatprep.subr.mxu0 0.0
  %486 = vmatpush2.msra.mxu0 0.0
  %487 = vmatprep.mubr.f32.mxu0 0.0
  %488 = vmatmul.mubr.f32.gmra.mxu0 %v412
  %v489 = vpop.f32.mrf.mxu0
  %v490 = vadd.f32 %v410, %v489
  %v491 = vpop.f32.mrf.mxu0
  %492 = vmatprep.mubr.f32.mxu0 0.0
  %493 = vmatmul.mubr.f32.gmra.mxu0 %v415
  %v494 = vpop.f32.mrf.mxu0
  %v495 = vadd.f32 %v410, %v494
  %v496 = vpop.f32.mrf.mxu0
  %497 = vmatprep.mubr.f32.mxu0 0.0
  %498 = vmatmul.mubr.f32.gmra.mxu0 %v418
  %v499 = vpop.f32.mrf.mxu0
  %v500 = vadd.f32 %v410, %v499
  %v501 = vpop.f32.mrf.mxu0
  %502 = vmatprep.mubr.f32.mxu0 0.0
  %503 = vmatmul.mubr.f32.gmra.mxu0 %v421
  %v504 = vpop.f32.mrf.mxu0
  %v505 = vadd.f32 %v410, %v504
  %v506 = vpop.f32.mrf.mxu0
  %507 = vdwg.mxu0
  %v508 = vmax.f32 %v490, 0.0
  %v509 = vmax.f32 %v495, 0.0
  %v510 = vmax.f32 %v500, 0.0
  %v511 = vmax.f32 %v505, 0.0
  %v512 = vlaneseq
  %v513 = vshrl.u32 %v512, 7
  %v514 = vsub.s32 0, %v513
  %v515 = vrot.slane %v34, %v514
  %v516 = vmul.f32 %v508, %v515
  %v517 = vmul.f32 %v509, %v515
  %v518 = vmul.f32 %v510, %v515
  %v519 = vmul.f32 %v511, %v515
  %vm520 = vcmask 130048
  %v521 = vsel %vm520, %v516, 0.0
  %522 = vadd.xlane.f32.xlu0 %v521
  %v523 = vpop.xlane.xlu0 %522
  %v524 = vsel %vm520, %v517, 0.0
  %525 = vadd.xlane.f32.xlu0 %v524
  %v526 = vpop.xlane.xlu0 %525
  %v527 = vsel %vm520, %v518, 0.0
  %528 = vadd.xlane.f32.xlu0 %v527
  %v529 = vpop.xlane.xlu0 %528
  %v530 = vsel %vm520, %v519, 0.0
  %531 = vadd.xlane.f32.xlu0 %v530
  %v532 = vpop.xlane.xlu0 %531
  %v533 = vlaneseq
  %v534 = vshrl.u32 %v533, 7
  %v535 = vsub.s32 0, %v534
  %v536 = vrot.slane %v35, %v535
  %v537 = vadd.f32 %v523, %v536
  %v538 = vadd.f32 %v526, %v536
  %v539 = vadd.f32 %v529, %v536
  %v540 = vadd.f32 %v532, %v536
  %v541 = vxor.u32 %v537, 2147483648
  %v542 = vxor.u32 %v538, 2147483648
  %v543 = vxor.u32 %v539, 2147483648
  %v544 = vxor.u32 %v540, 2147483648
  %v545 = vmul.f32 %v541, 1.442695
  %v546 = vpow.pop %v545
  %v547 = vmul.f32 %v542, 1.442695
  %v548 = vpow.pop %v547
  %v549 = vmul.f32 %v543, 1.442695
  %v550 = vpow.pop %v549
  %v551 = vmul.f32 %v544, 1.442695
  %v552 = vpow.pop %v551
  %v553 = vadd.f32 %v546, 1.0
  %v554 = vadd.f32 %v548, 1.0
  %v555 = vadd.f32 %v550, 1.0
  %v556 = vadd.f32 %v552, 1.0
  %v557 = vrcp.pop %v553
  %v558 = vmul.f32 1.0, %v557
  %v559 = vrcp.pop %v554
  %v560 = vmul.f32 1.0, %v559
  %v561 = vrcp.pop %v555
  %v562 = vmul.f32 1.0, %v561
  %v563 = vrcp.pop %v556
  %v564 = vmul.f32 1.0, %v563
  %vm565 = vcmask 7168
  %566 = vst.msk [vmem:[%s3] sm:$0xff] %vm565, %v558
  %567 = vst.msk [vmem:[%s3 + $0x8] sm:$0xff] %vm565, %v560
  %568 = vst.msk [vmem:[%s3 + $0x10] sm:$0xff] %vm565, %v562
  %569 = vst.msk [vmem:[%s3 + $0x18] sm:$0xff] %vm565, %v564
  // Predicated region
  $region10: #{tpu_custom_call.1} parent=0 // pred_check
    _
  $region11: #{tpu_custom_call.1} parent=0 // pred_check_branch
    %571 = sbr.rel (0) target = $region13
  $region12: #{tpu_custom_call.1} parent=0 // pred_region
    _
  $region13: #{tpu_custom_call.1} parent=0 // pred_fallthru
    _
  // Predicated region
  $region14: #{tpu_custom_call.1} parent=0 // pred_check
    _
  $region15: #{tpu_custom_call.1} parent=0 // pred_check_branch
    %573 = sbr.rel (0) target = $region17
  $region16: #{tpu_custom_call.1} parent=0 // pred_region
    _
  $region17: #{tpu_custom_call.1} parent=0 // pred_fallthru
    _
  // Predicated region
  $region18: #{tpu_custom_call.1} parent=0 // pred_check
    _
  $region19: #{tpu_custom_call.1} parent=0 // pred_check_branch
    %575 = sbr.rel (0) target = $region21
  $region20: #{tpu_custom_call.1} parent=0 // pred_region
    _
  $region21: #{tpu_custom_call.1} parent=0 // pred_fallthru
    _
  // Predicated region
  $region22: #{tpu_custom_call.1} parent=0 // pred_check
    _
  $region23: #{tpu_custom_call.1} parent=0 // pred_check_branch
    %577 = sbr.rel (0) target = $region25
  $region24: #{tpu_custom_call.1} parent=0 // pred_region
    _
  $region25: #{tpu_custom_call.1} parent=0 // pred_fallthru
    _

</llo_original>
